<compile_context>
chip_gen: v7x
topology: tpu7x:2x2x1
jax: 0.10.0
libtpu: 0.0.40
codegen_flags: <defaults>
</compile_context>

<pallas_src>
import numpy as np
import jax
import jax.numpy as jnp
from jax import lax
from jax.experimental import pallas as pl
from jax.experimental.pallas import tpu as pltpu


def _round_up(x, m):
    return ((x + m - 1) // m) * m


# ----------------------------------------------------------------------------
# Pallas kernel
# ----------------------------------------------------------------------------
def _make_condxd_kernel(n_gauss, sample_dim):
    D = sample_dim
    n_means = n_gauss * D
    n_diag = n_gauss * D
    mix_end = n_gauss                 # [0, mix_end)            -> mixing coefficients
    means_end = mix_end + n_means     # [mix_end, means_end)    -> means
    diag_end = means_end + n_diag     # [means_end, diag_end)   -> log-diagonal (exp'd)
    # [diag_end, ...)   -> lower-tri Cholesky elements + zero padding (copied)

    def kernel(cond_ref,
               w0_ref, b0_ref, w1_ref, b1_ref, w2_ref, b2_ref,
               wh_ref, bh_ref,
               prelu_ref,
               out_ref):
        x = cond_ref[...]                                        # (TB, cond_dim)

        def prelu(h, a):
            # nn.PReLU with a single shared parameter a
            return jnp.where(h >= 0.0, h, a * h)

        # ---- embedding stem: 3 x (Linear + PReLU) ------------------------------
        h = jnp.dot(x, w0_ref[...], preferred_element_type=jnp.float32) + b0_ref[...]
        h = prelu(h, prelu_ref[0])
        h = jnp.dot(h, w1_ref[...], preferred_element_type=jnp.float32) + b1_ref[...]
        h = prelu(h, prelu_ref[1])
        h = jnp.dot(h, w2_ref[...], preferred_element_type=jnp.float32) + b2_ref[...]
        h = prelu(h, prelu_ref[2])

        # ---- fused head: one MXU matmul, one lane-dense (128-padded) output ----
        y = jnp.dot(h, wh_ref[...], preferred_element_type=jnp.float32) + bh_ref[...]

        col = lax.broadcasted_iota(jnp.int32, y.shape, 1)
        is_mix = col < mix_end
        is_diag = jnp.logical_and(col >= means_end, col < diag_end)

        # softmax over the mixing-coefficient columns only
        neg_big = jnp.float32(-1e30)
        logits = jnp.where(is_mix, y, neg_big)
        m = jnp.max(logits, axis=-1, keepdims=True)
        e = jnp.where(is_mix, jnp.exp(logits - m), 0.0)
        inv_den = pl.reciprocal(jnp.sum(e, axis=-1, keepdims=True), approx=True)
        mix = e * inv_den

        # exp() only sees the log-diagonal columns (others clamped to 0 -> exp=1,
        # discarded by the select below) -> no spurious overflow on off-diagonals.
        diag_exp = jnp.exp(jnp.where(is_diag, y, 0.0))

        out_ref[...] = jnp.where(is_mix, mix, jnp.where(is_diag, diag_exp, y))

    return kernel


# ----------------------------------------------------------------------------
# Wrapper
# ----------------------------------------------------------------------------
def condxd_forward(conditional, params, n_gauss, sample_dim, tile_batch=1024):
    conditional = conditional.astype(jnp.float32)
    B, cond_dim = conditional.shape
    D = sample_dim
    n_means = n_gauss * D
    n_chol = n_gauss * D * (D + 1) // 2
    head_width = n_gauss + n_means + n_chol
    W_pad = _round_up(head_width, 128)        # lane-dense, unmasked output store
    vec_dim = params["w0"].shape[1]

    # Fuse the three head Linears into one weight/bias, zero-padded to W_pad.
    pad = W_pad - head_width
    wh = jnp.concatenate(
        [params["wm"], params["wmu"], params["wc"],
         jnp.zeros((vec_dim, pad), jnp.float32)], axis=1)
    bh = jnp.concatenate(
        [params["bm"], params["bmu"], params["bc"],
         jnp.zeros((1, pad), jnp.float32)], axis=1)

    # Batch tile: big enough to amortize per-step overhead, small enough for
    # v7x's 64 MiB VMEM (per step ~ 2*TB*(cond_dim + W_pad)*4B + TB*vec_dim*4B
    # plus the resident weights, all well under the default scoped limit).
    TB = min(tile_batch, _round_up(B, 8))
    B_pad = _round_up(B, TB)
    if B_pad != B:
        conditional = jnp.concatenate(
            [conditional, jnp.zeros((B_pad - B, cond_dim), jnp.float32)], axis=0)

    kernel = _make_condxd_kernel(n_gauss, sample_dim)
    grid = (B_pad // TB,)

    def resident(shape):
        nd = len(shape)
        return pl.BlockSpec(shape, lambda i, _nd=nd: (0,) * _nd)

    in_specs = [
        pl.BlockSpec((TB, cond_dim), lambda i: (i, 0)),        # streamed per tile
        resident(params["w0"].shape), resident(params["b0"].shape),
        resident(params["w1"].shape), resident(params["b1"].shape),
        resident(params["w2"].shape), resident(params["b2"].shape),
        resident(wh.shape), resident(bh.shape),
        pl.BlockSpec(memory_space=pltpu.MemorySpace.SMEM),     # PReLU scalars
    ]
    out_specs = pl.BlockSpec((TB, W_pad), lambda i: (i, 0))
    out_shape = jax.ShapeDtypeStruct((B_pad, W_pad), jnp.float32)

    fused = pl.pallas_call(
        kernel,
        out_shape=out_shape,
        grid=grid,
        in_specs=in_specs,
        out_specs=out_specs,
        compiler_params=pltpu.CompilerParams(
            dimension_semantics=("parallel",)),
    )(conditional,
      params["w0"], params["b0"], params["w1"], params["b1"],
      params["w2"], params["b2"], wh, bh, params["prelu"])

    fused = fused[:B]
    mixcoef = fused[:, :n_gauss]
    means = fused[:, n_gauss:n_gauss + n_means].reshape(B, n_gauss, D)
    chol_elem = fused[:, n_gauss + n_means:n_gauss + n_means + n_chol]

    # ---- glue: assemble Cholesky factor and covariances (tiny DxD work) --------
    diag = chol_elem[:, :n_means].reshape(B, n_gauss, D)            # already exp()
    lower = chol_elem[:, n_means:].reshape(B, n_gauss, D * (D - 1) // 2)
    L = diag[..., None] * jnp.eye(D, dtype=jnp.float32)             # (B, nG, D, D)
    tr, tc = np.tril_indices(D, -1)                                 # == torch.tril_indices
    L = L.at[:, :, tr, tc].set(lower)
    covars = jnp.einsum("bgik,bgjk->bgij", L, L) + 1e-4 * jnp.eye(D, dtype=jnp.float32)
    return mixcoef, means, covars


# ----------------------------------------------------------------------------
# Deterministic parameter init (mirrors nn.Linear / nn.PReLU defaults in shape)
# ----------------------------------------------------------------------------
def init_params(key, cond_dim, vec_dim, n_gauss, sample_dim):
    n_chol = n_gauss * sample_dim * (sample_dim + 1) // 2
    keys = jax.random.split(key, 12)

    def lin(kw, kb, fan_in, fan_out):
        lim = 1.0 / np.sqrt(fan_in)
        w = jax.random.uniform(kw, (fan_in, fan_out), jnp.float32, -lim, lim)
        b = jax.random.uniform(kb, (1, fan_out), jnp.float32, -lim, lim)
        return w, b

    w0, b0 = lin(keys[0], keys[1], cond_dim, vec_dim)
    w1, b1 = lin(keys[2], keys[3], vec_dim, vec_dim)
    w2, b2 = lin(keys[4], keys[5], vec_dim, vec_dim)
    wm, bm = lin(keys[6], keys[7], vec_dim, n_gauss)
    wmu, bmu = lin(keys[8], keys[9], vec_dim, n_gauss * sample_dim)
    wc, bc = lin(keys[10], keys[11], vec_dim, n_chol)
    prelu = jnp.array([0.25, 0.25, 0.25], jnp.float32)   # nn.PReLU() default init
    return dict(w0=w0, b0=b0, w1=w1, b1=b1, w2=w2, b2=b2,
                wm=wm, bm=bm, wmu=wmu, bmu=bmu, wc=wc, bc=bc, prelu=prelu)


# ----------------------------------------------------------------------------
# Pure-JAX reference (mirrors the PyTorch forward) for correctness check
# ----------------------------------------------------------------------------
def reference_forward(conditional, p, n_gauss, sample_dim):
    def prelu(h, a):
        return jnp.where(h >= 0.0, h, a * h)

    D = sample_dim
    B = conditional.shape[0]
    h = prelu(conditional @ p["w0"] + p["b0"], p["prelu"][0])
    h = prelu(h @ p["w1"] + p["b1"], p["prelu"][1])
    h = prelu(h @ p["w2"] + p["b2"], p["prelu"][2])
    mixcoef = jax.nn.softmax(h @ p["wm"] + p["bm"], axis=-1)
    means = (h @ p["wmu"] + p["bmu"]).reshape(B, n_gauss, D)
    ce = h @ p["wc"] + p["bc"]
    log_diag = ce[:, : n_gauss * D].reshape(B, n_gauss, D)
    lower = ce[:, n_gauss * D:].reshape(B, n_gauss, D * (D - 1) // 2)
    L = jnp.exp(log_diag)[..., None] * jnp.eye(D, dtype=jnp.float32)
    tr, tc = np.tril_indices(D, -1)
    L = L.at[:, :, tr, tc].set(lower)
    covars = jnp.einsum("bgik,bgjk->bgij", L, L) + 1e-4 * jnp.eye(D, dtype=jnp.float32)
    return mixcoef, means, covars


# ----------------------------------------------------------------------------
if __name__ == "__main__":
    # Small, deterministic problem consistent with the module's forward().
    B = 2
    conditional_dim = 5
    vec_dim = 32
    n_gauss = 4
    sample_dim = 3

    key = jax.random.PRNGKey(0)
    k_params, k_x = jax.random.split(key)
    params = init_params(k_params, conditional_dim, vec_dim, n_gauss, sample_dim)
    conditional = jax.random.normal(k_x, (B, conditional_dim), jnp.float32)

    mixcoef, means, covars = condxd_forward(conditional, params, n_gauss, sample_dim)
    jax.block_until_ready((mixcoef, means, covars))

    # Sanity check against a pure-JAX reference of the PyTorch forward.
    r_mix, r_means, r_cov = reference_forward(conditional, params, n_gauss, sample_dim)
    # mixcoef uses the EUP approximate reciprocal -> slightly looser tolerance.
    np.testing.assert_allclose(np.asarray(mixcoef), np.asarray(r_mix), rtol=5e-3, atol=5e-3)
    np.testing.assert_allclose(np.asarray(means), np.asarray(r_means), rtol=1e-5, atol=1e-5)
    np.testing.assert_allclose(np.asarray(covars), np.asarray(r_cov), rtol=1e-5, atol=1e-5)

    assert mixcoef.shape == (B, n_gauss)
    assert means.shape == (B, n_gauss, sample_dim)
    assert covars.shape == (B, n_gauss, sample_dim, sample_dim)

    print("KERNEL_OK")
</pallas_src>

<mosaic_0001>
module attributes {stable_mosaic.version = 11 : i64} {
  func.func @kernel(%arg0: i32, %arg1: memref<8x5xf32, #tpu.memory_space<vmem>>, %arg2: memref<5x32xf32, #tpu.memory_space<vmem>>, %arg3: memref<1x32xf32, #tpu.memory_space<vmem>>, %arg4: memref<32x32xf32, #tpu.memory_space<vmem>>, %arg5: memref<1x32xf32, #tpu.memory_space<vmem>>, %arg6: memref<32x32xf32, #tpu.memory_space<vmem>>, %arg7: memref<1x32xf32, #tpu.memory_space<vmem>>, %arg8: memref<32x128xf32, #tpu.memory_space<vmem>>, %arg9: memref<1x128xf32, #tpu.memory_space<vmem>>, %arg10: memref<3xf32, #tpu.memory_space<smem>>, %arg11: memref<8x128xf32, #tpu.memory_space<vmem>>) attributes {dimension_semantics = [#tpu.dimension_semantics<parallel>], iteration_bounds = array<i64: 1>, scalar_prefetch = 0 : i64, scratch_operands = 0 : i64, tpu.core_type = #tpu.core_type<tc>, window_params = [{transform_indices = @transform_0, window_bounds = array<i64: 8, 5>}, {pipeline_mode = #tpu.pipeline_mode<synchronous>, transform_indices = @transform_1, window_bounds = array<i64: 5, 32>}, {pipeline_mode = #tpu.pipeline_mode<synchronous>, transform_indices = @transform_2, window_bounds = array<i64: 1, 32>}, {pipeline_mode = #tpu.pipeline_mode<synchronous>, transform_indices = @transform_3, window_bounds = array<i64: 32, 32>}, {pipeline_mode = #tpu.pipeline_mode<synchronous>, transform_indices = @transform_4, window_bounds = array<i64: 1, 32>}, {pipeline_mode = #tpu.pipeline_mode<synchronous>, transform_indices = @transform_5, window_bounds = array<i64: 32, 32>}, {pipeline_mode = #tpu.pipeline_mode<synchronous>, transform_indices = @transform_6, window_bounds = array<i64: 1, 32>}, {pipeline_mode = #tpu.pipeline_mode<synchronous>, transform_indices = @transform_7, window_bounds = array<i64: 32, 128>}, {pipeline_mode = #tpu.pipeline_mode<synchronous>, transform_indices = @transform_8, window_bounds = array<i64: 1, 128>}, {transform_indices = @transform_9, window_bounds = array<i64: 3>}, {transform_indices = @transform_10, window_bounds = array<i64: 8, 128>}]} {
    %c0 = arith.constant 0 : index
    %c0_0 = arith.constant 0 : index
    %0 = vector.load %arg1[%c0, %c0_0] : memref<8x5xf32, #tpu.memory_space<vmem>>, vector<8x5xf32>
    %c0_1 = arith.constant 0 : index
    %c0_2 = arith.constant 0 : index
    %1 = vector.load %arg2[%c0_1, %c0_2] : memref<5x32xf32, #tpu.memory_space<vmem>>, vector<5x32xf32>
    %cst = arith.constant dense<0.000000e+00> : vector<8x32xf32>
    %2 = tpu.matmul %0, %1, %cst {dimension_numbers = #tpu.dot_dimension_numbers<[1], [0], [0], [1], [0, 0, 1, 1], [], []>} : vector<8x5xf32>, vector<5x32xf32>, vector<8x32xf32> -> vector<8x32xf32>
    %c0_3 = arith.constant 0 : index
    %c0_4 = arith.constant 0 : index
    %3 = vector.load %arg3[%c0_3, %c0_4] : memref<1x32xf32, #tpu.memory_space<vmem>>, vector<1x32xf32>
    %4 = vector.broadcast %3 : vector<1x32xf32> to vector<8x32xf32>
    %5 = arith.addf %2, %4 : vector<8x32xf32>
    %c0_5 = arith.constant 0 : index
    %6 = memref.load %arg10[%c0_5] : memref<3xf32, #tpu.memory_space<smem>>
    %cst_6 = arith.constant 0.000000e+00 : f32
    %7 = vector.broadcast %cst_6 : f32 to vector<8x32xf32>
    %8 = arith.cmpf oge, %5, %7 : vector<8x32xf32>
    %9 = vector.broadcast %6 : f32 to vector<8x32xf32>
    %10 = arith.mulf %9, %5 : vector<8x32xf32>
    %11 = arith.select %8, %5, %10 : vector<8x32xi1>, vector<8x32xf32>
    %c0_7 = arith.constant 0 : index
    %c0_8 = arith.constant 0 : index
    %12 = vector.load %arg4[%c0_7, %c0_8] : memref<32x32xf32, #tpu.memory_space<vmem>>, vector<32x32xf32>
    %cst_9 = arith.constant dense<0.000000e+00> : vector<8x32xf32>
    %13 = tpu.matmul %11, %12, %cst_9 {dimension_numbers = #tpu.dot_dimension_numbers<[1], [0], [0], [1], [0, 0, 1, 1], [], []>} : vector<8x32xf32>, vector<32x32xf32>, vector<8x32xf32> -> vector<8x32xf32>
    %c0_10 = arith.constant 0 : index
    %c0_11 = arith.constant 0 : index
    %14 = vector.load %arg5[%c0_10, %c0_11] : memref<1x32xf32, #tpu.memory_space<vmem>>, vector<1x32xf32>
    %15 = vector.broadcast %14 : vector<1x32xf32> to vector<8x32xf32>
    %16 = arith.addf %13, %15 : vector<8x32xf32>
    %c1 = arith.constant 1 : index
    %17 = memref.load %arg10[%c1] : memref<3xf32, #tpu.memory_space<smem>>
    %cst_12 = arith.constant 0.000000e+00 : f32
    %18 = vector.broadcast %cst_12 : f32 to vector<8x32xf32>
    %19 = arith.cmpf oge, %16, %18 : vector<8x32xf32>
    %20 = vector.broadcast %17 : f32 to vector<8x32xf32>
    %21 = arith.mulf %20, %16 : vector<8x32xf32>
    %22 = arith.select %19, %16, %21 : vector<8x32xi1>, vector<8x32xf32>
    %c0_13 = arith.constant 0 : index
    %c0_14 = arith.constant 0 : index
    %23 = vector.load %arg6[%c0_13, %c0_14] : memref<32x32xf32, #tpu.memory_space<vmem>>, vector<32x32xf32>
    %cst_15 = arith.constant dense<0.000000e+00> : vector<8x32xf32>
    %24 = tpu.matmul %22, %23, %cst_15 {dimension_numbers = #tpu.dot_dimension_numbers<[1], [0], [0], [1], [0, 0, 1, 1], [], []>} : vector<8x32xf32>, vector<32x32xf32>, vector<8x32xf32> -> vector<8x32xf32>
    %c0_16 = arith.constant 0 : index
    %c0_17 = arith.constant 0 : index
    %25 = vector.load %arg7[%c0_16, %c0_17] : memref<1x32xf32, #tpu.memory_space<vmem>>, vector<1x32xf32>
    %26 = vector.broadcast %25 : vector<1x32xf32> to vector<8x32xf32>
    %27 = arith.addf %24, %26 : vector<8x32xf32>
    %c2 = arith.constant 2 : index
    %28 = memref.load %arg10[%c2] : memref<3xf32, #tpu.memory_space<smem>>
    %cst_18 = arith.constant 0.000000e+00 : f32
    %29 = vector.broadcast %cst_18 : f32 to vector<8x32xf32>
    %30 = arith.cmpf oge, %27, %29 : vector<8x32xf32>
    %31 = vector.broadcast %28 : f32 to vector<8x32xf32>
    %32 = arith.mulf %31, %27 : vector<8x32xf32>
    %33 = arith.select %30, %27, %32 : vector<8x32xi1>, vector<8x32xf32>
    %c0_19 = arith.constant 0 : index
    %c0_20 = arith.constant 0 : index
    %34 = vector.load %arg8[%c0_19, %c0_20] : memref<32x128xf32, #tpu.memory_space<vmem>>, vector<32x128xf32>
    %cst_21 = arith.constant dense<0.000000e+00> : vector<8x128xf32>
    %35 = tpu.matmul %33, %34, %cst_21 {dimension_numbers = #tpu.dot_dimension_numbers<[1], [0], [0], [1], [0, 0, 1, 1], [], []>} : vector<8x32xf32>, vector<32x128xf32>, vector<8x128xf32> -> vector<8x128xf32>
    %c0_22 = arith.constant 0 : index
    %c0_23 = arith.constant 0 : index
    %36 = vector.load %arg9[%c0_22, %c0_23] : memref<1x128xf32, #tpu.memory_space<vmem>>, vector<1x128xf32>
    %37 = vector.broadcast %36 : vector<1x128xf32> to vector<8x128xf32>
    %38 = arith.addf %35, %37 : vector<8x128xf32>
    %39 = tpu.iota {dimensions = array<i32: 1>} : vector<8x128xi32>
    %c4_i32 = arith.constant 4 : i32
    %40 = vector.broadcast %c4_i32 : i32 to vector<8x128xi32>
    %41 = arith.cmpi slt, %39, %40 : vector<8x128xi32>
    %c16_i32 = arith.constant 16 : i32
    %42 = vector.broadcast %c16_i32 : i32 to vector<8x128xi32>
    %43 = arith.cmpi sge, %39, %42 : vector<8x128xi32>
    %c28_i32 = arith.constant 28 : i32
    %44 = vector.broadcast %c28_i32 : i32 to vector<8x128xi32>
    %45 = arith.cmpi slt, %39, %44 : vector<8x128xi32>
    %46 = arith.andi %43, %45 : vector<8x128xi1>
    %cst_24 = arith.constant -1.000000e+30 : f32
    %47 = vector.broadcast %cst_24 : f32 to vector<8x128xf32>
    %48 = arith.select %41, %38, %47 : vector<8x128xi1>, vector<8x128xf32>
    %cst_25 = arith.constant dense<0xFF800000> : vector<8xf32>
    %49 = vector.multi_reduction <maximumf>, %48, %cst_25 [1] : vector<8x128xf32> to vector<8xf32>
    %50 = vector.shape_cast %49 : vector<8xf32> to vector<8x1xf32>
    %51 = vector.broadcast %50 : vector<8x1xf32> to vector<8x128xf32>
    %52 = arith.subf %48, %51 : vector<8x128xf32>
    %53 = math.exp %52 : vector<8x128xf32>
    %cst_26 = arith.constant 0.000000e+00 : f32
    %54 = vector.broadcast %cst_26 : f32 to vector<8x128xf32>
    %55 = arith.select %41, %53, %54 : vector<8x128xi1>, vector<8x128xf32>
    %cst_27 = arith.constant dense<0.000000e+00> : vector<8xf32>
    %56 = vector.multi_reduction <add>, %55, %cst_27 [1] : vector<8x128xf32> to vector<8xf32>
    %57 = vector.shape_cast %56 : vector<8xf32> to vector<8x1xf32>
    %58 = tpu.reciprocal %57 {approx = true} : vector<8x1xf32> -> vector<8x1xf32>
    %59 = vector.broadcast %58 : vector<8x1xf32> to vector<8x128xf32>
    %60 = arith.mulf %55, %59 : vector<8x128xf32>
    %cst_28 = arith.constant 0.000000e+00 : f32
    %61 = vector.broadcast %cst_28 : f32 to vector<8x128xf32>
    %62 = arith.select %46, %38, %61 : vector<8x128xi1>, vector<8x128xf32>
    %63 = math.exp %62 : vector<8x128xf32>
    %64 = arith.select %46, %63, %38 : vector<8x128xi1>, vector<8x128xf32>
    %65 = arith.select %41, %60, %64 : vector<8x128xi1>, vector<8x128xf32>
    %c0_29 = arith.constant 0 : index
    %c0_30 = arith.constant 0 : index
    %66 = vector.load %arg11[%c0_29, %c0_30] : memref<8x128xf32, #tpu.memory_space<vmem>>, vector<8x128xf32>
    tpu.vector_store %arg11[%c0_29, %c0_30], %65 {strides = array<i32>} : memref<8x128xf32, #tpu.memory_space<vmem>>, vector<8x128xf32>,
    return
  }
  func.func @transform_0(%arg0: i32) -> (i32, i32) {
    %c0_i32 = arith.constant 0 : i32
    %c0_i32_0 = arith.constant 0 : i32
    return %arg0, %c0_i32 : i32, i32
  }
  func.func @transform_1(%arg0: i32) -> (i32, i32) {
    %c0_i32 = arith.constant 0 : i32
    %c0_i32_0 = arith.constant 0 : i32
    %c0_i32_1 = arith.constant 0 : i32
    return %c0_i32, %c0_i32_0 : i32, i32
  }
  func.func @transform_2(%arg0: i32) -> (i32, i32) {
    %c0_i32 = arith.constant 0 : i32
    %c0_i32_0 = arith.constant 0 : i32
    %c0_i32_1 = arith.constant 0 : i32
    return %c0_i32, %c0_i32_0 : i32, i32
  }
  func.func @transform_3(%arg0: i32) -> (i32, i32) {
    %c0_i32 = arith.constant 0 : i32
    %c0_i32_0 = arith.constant 0 : i32
    %c0_i32_1 = arith.constant 0 : i32
    return %c0_i32, %c0_i32_0 : i32, i32
  }
  func.func @transform_4(%arg0: i32) -> (i32, i32) {
    %c0_i32 = arith.constant 0 : i32
    %c0_i32_0 = arith.constant 0 : i32
    %c0_i32_1 = arith.constant 0 : i32
    return %c0_i32, %c0_i32_0 : i32, i32
  }
  func.func @transform_5(%arg0: i32) -> (i32, i32) {
    %c0_i32 = arith.constant 0 : i32
    %c0_i32_0 = arith.constant 0 : i32
    %c0_i32_1 = arith.constant 0 : i32
    return %c0_i32, %c0_i32_0 : i32, i32
  }
  func.func @transform_6(%arg0: i32) -> (i32, i32) {
    %c0_i32 = arith.constant 0 : i32
    %c0_i32_0 = arith.constant 0 : i32
    %c0_i32_1 = arith.constant 0 : i32
    return %c0_i32, %c0_i32_0 : i32, i32
  }
  func.func @transform_7(%arg0: i32) -> (i32, i32) {
    %c0_i32 = arith.constant 0 : i32
    %c0_i32_0 = arith.constant 0 : i32
    %c0_i32_1 = arith.constant 0 : i32
    return %c0_i32, %c0_i32_0 : i32, i32
  }
  func.func @transform_8(%arg0: i32) -> (i32, i32) {
    %c0_i32 = arith.constant 0 : i32
    %c0_i32_0 = arith.constant 0 : i32
    %c0_i32_1 = arith.constant 0 : i32
    return %c0_i32, %c0_i32_0 : i32, i32
  }
  func.func @transform_9(%arg0: i32) -> i32 {
    %c0_i32 = arith.constant 0 : i32
    %c0_i32_0 = arith.constant 0 : i32
    return %c0_i32 : i32
  }
  func.func @transform_10(%arg0: i32) -> (i32, i32) {
    %c0_i32 = arith.constant 0 : i32
    %c0_i32_0 = arith.constant 0 : i32
    return %arg0, %c0_i32 : i32, i32
  }
}

</mosaic_0001>

<llo_original>
// kernel: tpu_custom_call.1
$region0: #{tpu_custom_call.1}
  #allocation0 [shape = 'u32[]', space=smem, size = 0x4, offset = 0x4, fixed_abs, tag = 'smem constant byte address 0x4 - core index']
  #allocation1 [shape = 'u32[144,128]{1,0:T(1,128)}', space=vmem, size = 0x12000, scoped, tag = 'internal scratch']
  %s0 = inlined_call_operand.hbm [shape: f32[8,5], index: 0, kind: input, shape index: {}]
  %s1 = inlined_call_operand.hbm [shape: f32[5,32], index: 1, kind: input, shape index: {}]
  %s2 = inlined_call_operand.vmem [shape: f32[1,32], index: 2, kind: input, shape index: {}]
  %s3 = inlined_call_operand.hbm [shape: f32[32,32], index: 3, kind: input, shape index: {}]
  %s4 = inlined_call_operand.vmem [shape: f32[1,32], index: 4, kind: input, shape index: {}]
  %s5 = inlined_call_operand.hbm [shape: f32[32,32], index: 5, kind: input, shape index: {}]
  %s6 = inlined_call_operand.vmem [shape: f32[1,32], index: 6, kind: input, shape index: {}]
  %s7 = inlined_call_operand.hbm [shape: f32[32,128], index: 7, kind: input, shape index: {}]
  %s8 = inlined_call_operand.vmem [shape: f32[1,128], index: 8, kind: input, shape index: {}]
  %s9 = inlined_call_operand.vmem [shape: f32[3], index: 9, kind: input, shape index: {}]
  %s10 = inlined_call_operand.hbm [shape: f32[8,128], index: 10, kind: output, shape index: {}]
  %s11 = sld [smem:[#allocation0]]
  $region74: #{tpu_custom_call.1} parent=0
    _
  %s13 = ssub.s32 1, %s11
  %s14 = scalar_select 0, %s13, %s11
  $region1: #{tpu_custom_call.1} parent=0
    #allocation2 [shape = 'u8[4096]{0}', space=vmem, size = 0x1000, scoped, tag = 'input window, operand 0, single buffered']
    #allocation3 [shape = 's32[1]{0}', space=sflag, size = 0x4, scoped, tag = 'scoped memory for tpu_custom_call.1']
    #allocation4 [shape = 's32[1]{0}', space=sflag, size = 0x4, scoped, tag = 'scoped memory for tpu_custom_call.1']
    #allocation5 [shape = 's32[1]{0}', space=sflag, size = 0x4, scoped, tag = 'scoped memory for tpu_custom_call.1']
    #allocation6 [shape = 'u8[4096]{0}', space=vmem, size = 0x1000, scoped, tag = 'input window, operand 1, single buffered']
    #allocation7 [shape = 's32[1]{0}', space=sflag, size = 0x4, scoped, tag = 'scoped memory for tpu_custom_call.1']
    #allocation8 [shape = 'u8[16384]{0}', space=vmem, size = 0x4000, scoped, tag = 'input window, operand 3, single buffered']
    #allocation9 [shape = 'u8[16384]{0}', space=vmem, size = 0x4000, scoped, tag = 'input window, operand 5, single buffered']
    #allocation10 [shape = 's32[1]{0}', space=sflag, size = 0x4, scoped, tag = 'scoped memory for tpu_custom_call.1']
    #allocation11 [shape = 'u8[16384]{0}', space=vmem, size = 0x4000, scoped, tag = 'input window, operand 7, single buffered']
    #allocation12 [shape = 'u8[512]{0}', space=smem, size = 0x200, scoped, tag = 'input window, operand 9, single buffered']
    #allocation13 [shape = 'u8[4096]{0}', space=vmem, size = 0x1000, scoped, tag = 'output window, operand 0, single buffered']
    %15 = vsyncpa [#allocation3], 0
    %16 = vsyncpa [#allocation7], 0
    %17 = vsyncpa [#allocation10], 0
    %18 = vsyncpa [#allocation5], 0
    %19 = vsyncpa [#allocation4], 0
    // Predicated region
    $region2: #{tpu_custom_call.1} parent=1 // pred_check
      _
    $region3: #{tpu_custom_call.1} parent=1 // pred_check_branch
      %21 = sbr.rel (0) target = $region5
    $region4: #{tpu_custom_call.1} parent=1 // pred_region
      %s23 = ssub.s32 128, 128
      %24 = vsyncadd [#allocation3], %s23
      %s26 = sshll.u32 [#allocation2], 4
      %s27 = int_to_ptr.vmem [resolvable:$true] %s26
      %29 = dma.hbm_to_vmem [thread:$0]  %s0, 128, %s27, [#allocation3]
    $region5: #{tpu_custom_call.1} parent=1 // pred_fallthru
      _
    // Predicated region
    $region6: #{tpu_custom_call.1} parent=1 // pred_check
      _
    $region7: #{tpu_custom_call.1} parent=1 // pred_check_branch
      %31 = sbr.rel (0) target = $region9
    $region8: #{tpu_custom_call.1} parent=1 // pred_region
      %s33 = ssub.s32 128, 128
      %34 = vsyncadd [#allocation7], %s33
      %s36 = sshll.u32 [#allocation6], 4
      %s37 = int_to_ptr.vmem [resolvable:$true] %s36
      %39 = dma.hbm_to_vmem [thread:$0]  %s1, 128, %s37, [#allocation7]
    $region9: #{tpu_custom_call.1} parent=1 // pred_fallthru
      _
    // Predicated region
    $region10: #{tpu_custom_call.1} parent=1 // pred_check
      _
    $region11: #{tpu_custom_call.1} parent=1 // pred_check_branch
      %41 = sbr.rel (0) target = $region13
    $region12: #{tpu_custom_call.1} parent=1 // pred_region
      _
    $region13: #{tpu_custom_call.1} parent=1 // pred_fallthru
      _
    // Predicated region
    $region14: #{tpu_custom_call.1} parent=1 // pred_check
      _
    $region15: #{tpu_custom_call.1} parent=1 // pred_check_branch
      %43 = sbr.rel (0) target = $region17
    $region16: #{tpu_custom_call.1} parent=1 // pred_region
      %s45 = ssub.s32 512, 512
      %46 = vsyncadd [#allocation7], %s45
      %s47 = sshll.u32 [#allocation8], 4
      %s48 = int_to_ptr.vmem [resolvable:$true] %s47
      %53 = dma.hbm_to_vmem [thread:$0]  %s3, 512, %s48, [#allocation7], 128, 128, 8
    $region17: #{tpu_custom_call.1} parent=1 // pred_fallthru
      _
    // Predicated region
    $region18: #{tpu_custom_call.1} parent=1 // pred_check
      _
    $region19: #{tpu_custom_call.1} parent=1 // pred_check_branch
      %55 = sbr.rel (0) target = $region21
    $region20: #{tpu_custom_call.1} parent=1 // pred_region
      _
    $region21: #{tpu_custom_call.1} parent=1 // pred_fallthru
      _
    // Predicated region
    $region22: #{tpu_custom_call.1} parent=1 // pred_check
      _
    $region23: #{tpu_custom_call.1} parent=1 // pred_check_branch
      %57 = sbr.rel (0) target = $region25
    $region24: #{tpu_custom_call.1} parent=1 // pred_region
      %s59 = ssub.s32 512, 512
      %60 = vsyncadd [#allocation10], %s59
      %s61 = sshll.u32 [#allocation9], 4
      %s62 = int_to_ptr.vmem [resolvable:$true] %s61
      %67 = dma.hbm_to_vmem [thread:$0]  %s5, 512, %s62, [#allocation10], 128, 128, 8
    $region25: #{tpu_custom_call.1} parent=1 // pred_fallthru
      _
    // Predicated region
    $region26: #{tpu_custom_call.1} parent=1 // pred_check
      _
    $region27: #{tpu_custom_call.1} parent=1 // pred_check_branch
      %69 = sbr.rel (0) target = $region29
    $region28: #{tpu_custom_call.1} parent=1 // pred_region
      _
    $region29: #{tpu_custom_call.1} parent=1 // pred_fallthru
      _
    // Predicated region
    $region30: #{tpu_custom_call.1} parent=1 // pred_check
      _
    $region31: #{tpu_custom_call.1} parent=1 // pred_check_branch
      %71 = sbr.rel (0) target = $region33
    $region32: #{tpu_custom_call.1} parent=1 // pred_region
      %s73 = ssub.s32 512, 512
      %74 = vsyncadd [#allocation10], %s73
      %s75 = sshll.u32 [#allocation11], 4
      %s76 = int_to_ptr.vmem [resolvable:$true] %s75
      %81 = dma.hbm_to_vmem [thread:$0]  %s7, 512, %s76, [#allocation10], 128, 128, 8
    $region33: #{tpu_custom_call.1} parent=1 // pred_fallthru
      _
    // Predicated region
    $region34: #{tpu_custom_call.1} parent=1 // pred_check
      _
    $region35: #{tpu_custom_call.1} parent=1 // pred_check_branch
      %83 = sbr.rel (0) target = $region37
    $region36: #{tpu_custom_call.1} parent=1 // pred_region
      _
    $region37: #{tpu_custom_call.1} parent=1 // pred_fallthru
      _
    // Predicated region
    $region38: #{tpu_custom_call.1} parent=1 // pred_check
      _
    $region39: #{tpu_custom_call.1} parent=1 // pred_check_branch
      %85 = sbr.rel (0) target = $region41
    $region40: #{tpu_custom_call.1} parent=1 // pred_region
      %s87 = ssub.s32 16, 16
      %88 = vsyncadd [#allocation5], %s87
      %s90 = sshll.u32 %s9, 4
      %s91 = int_to_ptr.vmem [resolvable:$true] %s90
      %93 = dma.vmem_to_smem %s91, 16, [#allocation12], [#allocation5]
    $region41: #{tpu_custom_call.1} parent=1 // pred_fallthru
      _
    // Predicated region
    $region42: #{tpu_custom_call.1} parent=1 // pred_check
      _
    $region43: #{tpu_custom_call.1} parent=1 // pred_check_branch
      %95 = sbr.rel (0) target = $region45
    $region44: #{tpu_custom_call.1} parent=1 // pred_region
      %96 = dma.done [#allocation3], 128
    $region45: #{tpu_custom_call.1} parent=1 // pred_fallthru
      _
    // Predicated region
    $region46: #{tpu_custom_call.1} parent=1 // pred_check
      _
    $region47: #{tpu_custom_call.1} parent=1 // pred_check_branch
      %98 = sbr.rel (0) target = $region49
    $region48: #{tpu_custom_call.1} parent=1 // pred_region
      %99 = dma.done [#allocation7], 128
    $region49: #{tpu_custom_call.1} parent=1 // pred_fallthru
      _
    // Predicated region
    $region50: #{tpu_custom_call.1} parent=1 // pred_check
      _
    $region51: #{tpu_custom_call.1} parent=1 // pred_check_branch
      %101 = sbr.rel (0) target = $region53
    $region52: #{tpu_custom_call.1} parent=1 // pred_region
      %102 = dma.done [#allocation7], 512
    $region53: #{tpu_custom_call.1} parent=1 // pred_fallthru
      _
    // Predicated region
    $region54: #{tpu_custom_call.1} parent=1 // pred_check
      _
    $region55: #{tpu_custom_call.1} parent=1 // pred_check_branch
      %104 = sbr.rel (0) target = $region57
    $region56: #{tpu_custom_call.1} parent=1 // pred_region
      %105 = dma.done [#allocation10], 512
    $region57: #{tpu_custom_call.1} parent=1 // pred_fallthru
      _
    // Predicated region
    $region58: #{tpu_custom_call.1} parent=1 // pred_check
      _
    $region59: #{tpu_custom_call.1} parent=1 // pred_check_branch
      %107 = sbr.rel (0) target = $region61
    $region60: #{tpu_custom_call.1} parent=1 // pred_region
      %108 = dma.done [#allocation10], 512
    $region61: #{tpu_custom_call.1} parent=1 // pred_fallthru
      _
    // Predicated region
    $region62: #{tpu_custom_call.1} parent=1 // pred_check
      _
    $region63: #{tpu_custom_call.1} parent=1 // pred_check_branch
      %110 = sbr.rel (0) target = $region65
    $region64: #{tpu_custom_call.1} parent=1 // pred_region
      %111 = dma.done [#allocation5], 16
    $region65: #{tpu_custom_call.1} parent=1 // pred_fallthru
      _
    %112 = sfence
    %v113 = vld [vmem:[#allocation2] sm:$0xff]
    %v114 = vld [vmem:[#allocation6] sm:$0x1f]
    %v115 = vld [vmem:[%s2] sm:$0x1]
    %v117 = vlaneseq
    %v118 = vshrl.u32 %v117, 7
    %v119 = vsub.s32 0, %v118
    %v120 = vrot.slane %v115, %v119
    %vm122 = vcmask 39936
    %v124 = vsel %vm122, %v113, 0
    %vm126 = vcmask 1044480
    %v128 = vsel %vm126, %v114, 0
    %130 = vmatprep.subr.mxu0 0.0
    %131 = vmatpush1.msra.mxu0 %v128
    %132 = vmatprep.subr.mxu0 0.0
    %133 = vmatpush1.msra.mxu0 0.0
    %134 = vmatprep.subr.mxu0 0.0
    %135 = vmatpush1.msra.mxu0 0.0
    %136 = vmatprep.subr.mxu0 0.0
    %137 = vmatpush1.msra.mxu0 0.0
    %138 = vmatprep.subr.mxu0 0.0
    %139 = vmatpush1.msra.mxu0 0.0
    %140 = vmatprep.subr.mxu0 0.0
    %141 = vmatpush1.msra.mxu0 0.0
    %142 = vmatprep.subr.mxu0 0.0
    %143 = vmatpush1.msra.mxu0 0.0
    %144 = vmatprep.subr.mxu0 0.0
    %145 = vmatpush1.msra.mxu0 0.0
    %146 = vmatprep.subr.mxu0 0.0
    %147 = vmatpush1.msra.mxu0 0.0
    %148 = vmatprep.subr.mxu0 0.0
    %149 = vmatpush1.msra.mxu0 0.0
    %150 = vmatprep.subr.mxu0 0.0
    %151 = vmatpush1.msra.mxu0 0.0
    %152 = vmatprep.subr.mxu0 0.0
    %153 = vmatpush1.msra.mxu0 0.0
    %154 = vmatprep.subr.mxu0 0.0
    %155 = vmatpush1.msra.mxu0 0.0
    %156 = vmatprep.subr.mxu0 0.0
    %157 = vmatpush1.msra.mxu0 0.0
    %158 = vmatprep.subr.mxu0 0.0
    %159 = vmatpush1.msra.mxu0 0.0
    %160 = vmatprep.subr.mxu0 0.0
    %161 = vmatpush1.msra.mxu0 0.0
    %162 = vmatprep.subr.mxu0 0.0
    %163 = vmatpush1.msra.mxu0 0.0
    %164 = vmatprep.subr.mxu0 0.0
    %165 = vmatpush1.msra.mxu0 0.0
    %166 = vmatprep.subr.mxu0 0.0
    %167 = vmatpush1.msra.mxu0 0.0
    %168 = vmatprep.subr.mxu0 0.0
    %169 = vmatpush1.msra.mxu0 0.0
    %170 = vmatprep.subr.mxu0 0.0
    %171 = vmatpush1.msra.mxu0 0.0
    %172 = vmatprep.subr.mxu0 0.0
    %173 = vmatpush1.msra.mxu0 0.0
    %174 = vmatprep.subr.mxu0 0.0
    %175 = vmatpush1.msra.mxu0 0.0
    %176 = vmatprep.subr.mxu0 0.0
    %177 = vmatpush1.msra.mxu0 0.0
    %178 = vmatprep.subr.mxu0 0.0
    %179 = vmatpush1.msra.mxu0 0.0
    %180 = vmatprep.subr.mxu0 0.0
    %181 = vmatpush1.msra.mxu0 0.0
    %182 = vmatprep.subr.mxu0 0.0
    %183 = vmatpush1.msra.mxu0 0.0
    %184 = vmatprep.subr.mxu0 0.0
    %185 = vmatpush1.msra.mxu0 0.0
    %186 = vmatprep.subr.mxu0 0.0
    %187 = vmatpush1.msra.mxu0 0.0
    %188 = vmatprep.subr.mxu0 0.0
    %189 = vmatpush1.msra.mxu0 0.0
    %190 = vmatprep.subr.mxu0 0.0
    %191 = vmatpush1.msra.mxu0 0.0
    %192 = vmatprep.subr.mxu0 0.0
    %193 = vmatpush1.msra.mxu0 0.0
    %194 = vmatprep.mubr.f32.mxu0 0.0
    %195 = vmatmul.mubr.f32.gmra.mrb[0].mxu0 %v124
    %v196 = vpop.f32.mrb[0].mxu0
    %v197 = vadd.f32 %v120, %v196
    %v198 = vpop.f32.mrb[0].mxu0
    %199 = vdwg.mxu0
    %s200 = sld [smem:[#allocation12]]
    %vm201 = vcmp.ge.f32.partialorder %v197, 0.0
    %v202 = vstv %s200
    %v203 = vmul.f32 %v202, %v197
    %v204 = vsel %vm201, %v197, %v203
    %v205 = vld [vmem:[#allocation8] sm:$0xff]
    %v206 = vld [vmem:[#allocation8 + $0x8] sm:$0xff]
    %v207 = vld [vmem:[#allocation8 + $0x10] sm:$0xff]
    %v208 = vld [vmem:[#allocation8 + $0x18] sm:$0xff]
    %v209 = vld [vmem:[%s4] sm:$0x1]
    %v211 = vlaneseq
    %v212 = vshrl.u32 %v211, 7
    %v213 = vsub.s32 0, %v212
    %v214 = vrot.slane %v209, %v213
    %vm216 = vcmask 261120
    %v218 = vsel %vm216, %v204, 0
    %220 = vmatprep.subr.mxu0 0.0
    %221 = vmatpush1.msra.mxu0 %v205
    %222 = vmatprep.subr.mxu0 0.0
    %223 = vmatpush1.msra.mxu0 %v206
    %224 = vmatprep.subr.mxu0 0.0
    %225 = vmatpush1.msra.mxu0 %v207
    %226 = vmatprep.subr.mxu0 0.0
    %227 = vmatpush1.msra.mxu0 %v208
    %228 = vmatprep.subr.mxu0 0.0
    %229 = vmatpush1.msra.mxu0 0.0
    %230 = vmatprep.subr.mxu0 0.0
    %231 = vmatpush1.msra.mxu0 0.0
    %232 = vmatprep.subr.mxu0 0.0
    %233 = vmatpush1.msra.mxu0 0.0
    %234 = vmatprep.subr.mxu0 0.0
    %235 = vmatpush1.msra.mxu0 0.0
    %236 = vmatprep.subr.mxu0 0.0
    %237 = vmatpush1.msra.mxu0 0.0
    %238 = vmatprep.subr.mxu0 0.0
    %239 = vmatpush1.msra.mxu0 0.0
    %240 = vmatprep.subr.mxu0 0.0
    %241 = vmatpush1.msra.mxu0 0.0
    %242 = vmatprep.subr.mxu0 0.0
    %243 = vmatpush1.msra.mxu0 0.0
    %244 = vmatprep.subr.mxu0 0.0
    %245 = vmatpush1.msra.mxu0 0.0
    %246 = vmatprep.subr.mxu0 0.0
    %247 = vmatpush1.msra.mxu0 0.0
    %248 = vmatprep.subr.mxu0 0.0
    %249 = vmatpush1.msra.mxu0 0.0
    %250 = vmatprep.subr.mxu0 0.0
    %251 = vmatpush1.msra.mxu0 0.0
    %252 = vmatprep.subr.mxu0 0.0
    %253 = vmatpush1.msra.mxu0 0.0
    %254 = vmatprep.subr.mxu0 0.0
    %255 = vmatpush1.msra.mxu0 0.0
    %256 = vmatprep.subr.mxu0 0.0
    %257 = vmatpush1.msra.mxu0 0.0
    %258 = vmatprep.subr.mxu0 0.0
    %259 = vmatpush1.msra.mxu0 0.0
    %260 = vmatprep.subr.mxu0 0.0
    %261 = vmatpush1.msra.mxu0 0.0
    %262 = vmatprep.subr.mxu0 0.0
    %263 = vmatpush1.msra.mxu0 0.0
    %264 = vmatprep.subr.mxu0 0.0
    %265 = vmatpush1.msra.mxu0 0.0
    %266 = vmatprep.subr.mxu0 0.0
    %267 = vmatpush1.msra.mxu0 0.0
    %268 = vmatprep.subr.mxu0 0.0
    %269 = vmatpush1.msra.mxu0 0.0
    %270 = vmatprep.subr.mxu0 0.0
    %271 = vmatpush1.msra.mxu0 0.0
    %272 = vmatprep.subr.mxu0 0.0
    %273 = vmatpush1.msra.mxu0 0.0
    %274 = vmatprep.subr.mxu0 0.0
    %275 = vmatpush1.msra.mxu0 0.0
    %276 = vmatprep.subr.mxu0 0.0
    %277 = vmatpush1.msra.mxu0 0.0
    %278 = vmatprep.subr.mxu0 0.0
    %279 = vmatpush1.msra.mxu0 0.0
    %280 = vmatprep.subr.mxu0 0.0
    %281 = vmatpush1.msra.mxu0 0.0
    %282 = vmatprep.subr.mxu0 0.0
    %283 = vmatpush1.msra.mxu0 0.0
    %284 = vmatprep.mubr.f32.mxu0 0.0
    %285 = vmatmul.mubr.f32.gmra.mrb[0].mxu0 %v218
    %v286 = vpop.f32.mrb[0].mxu0
    %v287 = vadd.f32 %v214, %v286
    %v288 = vpop.f32.mrb[0].mxu0
    %289 = vdwg.mxu0
    %s290 = sld [smem:[#allocation12 + $0x1]]
    %vm291 = vcmp.ge.f32.partialorder %v287, 0.0
    %v292 = vstv %s290
    %v293 = vmul.f32 %v292, %v287
    %v294 = vsel %vm291, %v287, %v293
    %v295 = vld [vmem:[#allocation9] sm:$0xff]
    %v296 = vld [vmem:[#allocation9 + $0x8] sm:$0xff]
    %v297 = vld [vmem:[#allocation9 + $0x10] sm:$0xff]
    %v298 = vld [vmem:[#allocation9 + $0x18] sm:$0xff]
    %v299 = vld [vmem:[%s6] sm:$0x1]
    %v301 = vlaneseq
    %v302 = vshrl.u32 %v301, 7
    %v303 = vsub.s32 0, %v302
    %v304 = vrot.slane %v299, %v303
    %v307 = vsel %vm216, %v294, 0
    %309 = vmatprep.subr.mxu0 0.0
    %310 = vmatpush1.msra.mxu0 %v295
    %311 = vmatprep.subr.mxu0 0.0
    %312 = vmatpush1.msra.mxu0 %v296
    %313 = vmatprep.subr.mxu0 0.0
    %314 = vmatpush1.msra.mxu0 %v297
    %315 = vmatprep.subr.mxu0 0.0
    %316 = vmatpush1.msra.mxu0 %v298
    %317 = vmatprep.subr.mxu0 0.0
    %318 = vmatpush1.msra.mxu0 0.0
    %319 = vmatprep.subr.mxu0 0.0
    %320 = vmatpush1.msra.mxu0 0.0
    %321 = vmatprep.subr.mxu0 0.0
    %322 = vmatpush1.msra.mxu0 0.0
    %323 = vmatprep.subr.mxu0 0.0
    %324 = vmatpush1.msra.mxu0 0.0
    %325 = vmatprep.subr.mxu0 0.0
    %326 = vmatpush1.msra.mxu0 0.0
    %327 = vmatprep.subr.mxu0 0.0
    %328 = vmatpush1.msra.mxu0 0.0
    %329 = vmatprep.subr.mxu0 0.0
    %330 = vmatpush1.msra.mxu0 0.0
    %331 = vmatprep.subr.mxu0 0.0
    %332 = vmatpush1.msra.mxu0 0.0
    %333 = vmatprep.subr.mxu0 0.0
    %334 = vmatpush1.msra.mxu0 0.0
    %335 = vmatprep.subr.mxu0 0.0
    %336 = vmatpush1.msra.mxu0 0.0
    %337 = vmatprep.subr.mxu0 0.0
    %338 = vmatpush1.msra.mxu0 0.0
    %339 = vmatprep.subr.mxu0 0.0
    %340 = vmatpush1.msra.mxu0 0.0
    %341 = vmatprep.subr.mxu0 0.0
    %342 = vmatpush1.msra.mxu0 0.0
    %343 = vmatprep.subr.mxu0 0.0
    %344 = vmatpush1.msra.mxu0 0.0
    %345 = vmatprep.subr.mxu0 0.0
    %346 = vmatpush1.msra.mxu0 0.0
    %347 = vmatprep.subr.mxu0 0.0
    %348 = vmatpush1.msra.mxu0 0.0
    %349 = vmatprep.subr.mxu0 0.0
    %350 = vmatpush1.msra.mxu0 0.0
    %351 = vmatprep.subr.mxu0 0.0
    %352 = vmatpush1.msra.mxu0 0.0
    %353 = vmatprep.subr.mxu0 0.0
    %354 = vmatpush1.msra.mxu0 0.0
    %355 = vmatprep.subr.mxu0 0.0
    %356 = vmatpush1.msra.mxu0 0.0
    %357 = vmatprep.subr.mxu0 0.0
    %358 = vmatpush1.msra.mxu0 0.0
    %359 = vmatprep.subr.mxu0 0.0
    %360 = vmatpush1.msra.mxu0 0.0
    %361 = vmatprep.subr.mxu0 0.0
    %362 = vmatpush1.msra.mxu0 0.0
    %363 = vmatprep.subr.mxu0 0.0
    %364 = vmatpush1.msra.mxu0 0.0
    %365 = vmatprep.subr.mxu0 0.0
    %366 = vmatpush1.msra.mxu0 0.0
    %367 = vmatprep.subr.mxu0 0.0
    %368 = vmatpush1.msra.mxu0 0.0
    %369 = vmatprep.subr.mxu0 0.0
    %370 = vmatpush1.msra.mxu0 0.0
    %371 = vmatprep.subr.mxu0 0.0
    %372 = vmatpush1.msra.mxu0 0.0
    %373 = vmatprep.mubr.f32.mxu0 0.0
    %374 = vmatmul.mubr.f32.gmra.mrb[0].mxu0 %v307
    %v375 = vpop.f32.mrb[0].mxu0
    %v376 = vadd.f32 %v304, %v375
    %v377 = vpop.f32.mrb[0].mxu0
    %378 = vdwg.mxu0
    %s379 = sld [smem:[#allocation12 + $0x2]]
    %vm380 = vcmp.ge.f32.partialorder %v376, 0.0
    %v381 = vstv %s379
    %v382 = vmul.f32 %v381, %v376
    %v383 = vsel %vm380, %v376, %v382
    %v384 = vld [vmem:[#allocation11] sm:$0xff]
    %v385 = vld [vmem:[#allocation11 + $0x8] sm:$0xff]
    %v386 = vld [vmem:[#allocation11 + $0x10] sm:$0xff]
    %v387 = vld [vmem:[#allocation11 + $0x18] sm:$0xff]
    %v388 = vld [vmem:[%s8] sm:$0x1]
    %v390 = vlaneseq
    %v391 = vshrl.u32 %v390, 7
    %v392 = vsub.s32 0, %v391
    %v393 = vrot.slane %v388, %v392
    %v396 = vsel %vm216, %v383, 0
    %398 = vmatprep.subr.mxu0 0.0
    %399 = vmatpush1.msra.mxu0 %v384
    %400 = vmatprep.subr.mxu0 0.0
    %401 = vmatpush1.msra.mxu0 %v385
    %402 = vmatprep.subr.mxu0 0.0
    %403 = vmatpush1.msra.mxu0 %v386
    %404 = vmatprep.subr.mxu0 0.0
    %405 = vmatpush1.msra.mxu0 %v387
    %406 = vmatprep.subr.mxu0 0.0
    %407 = vmatpush1.msra.mxu0 0.0
    %408 = vmatprep.subr.mxu0 0.0
    %409 = vmatpush1.msra.mxu0 0.0
    %410 = vmatprep.subr.mxu0 0.0
    %411 = vmatpush1.msra.mxu0 0.0
    %412 = vmatprep.subr.mxu0 0.0
    %413 = vmatpush1.msra.mxu0 0.0
    %414 = vmatprep.subr.mxu0 0.0
    %415 = vmatpush1.msra.mxu0 0.0
    %416 = vmatprep.subr.mxu0 0.0
    %417 = vmatpush1.msra.mxu0 0.0
    %418 = vmatprep.subr.mxu0 0.0
    %419 = vmatpush1.msra.mxu0 0.0
    %420 = vmatprep.subr.mxu0 0.0
    %421 = vmatpush1.msra.mxu0 0.0
    %422 = vmatprep.subr.mxu0 0.0
    %423 = vmatpush1.msra.mxu0 0.0
    %424 = vmatprep.subr.mxu0 0.0
    %425 = vmatpush1.msra.mxu0 0.0
    %426 = vmatprep.subr.mxu0 0.0
    %427 = vmatpush1.msra.mxu0 0.0
    %428 = vmatprep.subr.mxu0 0.0
    %429 = vmatpush1.msra.mxu0 0.0
    %430 = vmatprep.subr.mxu0 0.0
    %431 = vmatpush1.msra.mxu0 0.0
    %432 = vmatprep.subr.mxu0 0.0
    %433 = vmatpush1.msra.mxu0 0.0
    %434 = vmatprep.subr.mxu0 0.0
    %435 = vmatpush1.msra.mxu0 0.0
    %436 = vmatprep.subr.mxu0 0.0
    %437 = vmatpush1.msra.mxu0 0.0
    %438 = vmatprep.subr.mxu0 0.0
    %439 = vmatpush1.msra.mxu0 0.0
    %440 = vmatprep.subr.mxu0 0.0
    %441 = vmatpush1.msra.mxu0 0.0
    %442 = vmatprep.subr.mxu0 0.0
    %443 = vmatpush1.msra.mxu0 0.0
    %444 = vmatprep.subr.mxu0 0.0
    %445 = vmatpush1.msra.mxu0 0.0
    %446 = vmatprep.subr.mxu0 0.0
    %447 = vmatpush1.msra.mxu0 0.0
    %448 = vmatprep.subr.mxu0 0.0
    %449 = vmatpush1.msra.mxu0 0.0
    %450 = vmatprep.subr.mxu0 0.0
    %451 = vmatpush1.msra.mxu0 0.0
    %452 = vmatprep.subr.mxu0 0.0
    %453 = vmatpush1.msra.mxu0 0.0
    %454 = vmatprep.subr.mxu0 0.0
    %455 = vmatpush1.msra.mxu0 0.0
    %456 = vmatprep.subr.mxu0 0.0
    %457 = vmatpush1.msra.mxu0 0.0
    %458 = vmatprep.subr.mxu0 0.0
    %459 = vmatpush1.msra.mxu0 0.0
    %460 = vmatprep.subr.mxu0 0.0
    %461 = vmatpush1.msra.mxu0 0.0
    %462 = vmatprep.mubr.f32.mxu0 0.0
    %463 = vmatmul.mubr.f32.gmra.mrb[0].mxu0 %v396
    %v464 = vpop.f32.mrb[0].mxu0
    %v465 = vadd.f32 %v393, %v464
    %v466 = vpop.f32.mrb[0].mxu0
    %467 = vdwg.mxu0
    %v468 = vlaneseq
    %v469 = vand.u32 %v468, 127
    %vm470 = vcmp.lt.s32.totalorder %v469, 4
    %vm471 = vcmp.ge.s32.totalorder %v469, 16
    %vm472 = vcmp.lt.s32.totalorder %v469, 28
    %vm473 = vmand %vm471, %vm472
    %v474 = vsel %vm470, %v465, -1e+30
    %475 = vmax.xlane.f32.xlu0 %v474
    %v476 = vpop.xlane.xlu0 %475
    %v477 = vsub.f32 %v474, %v476
    %v478 = vmul.f32 %v477, 1.442695
    %v479 = vpow.pop %v478
    %v480 = vsel %vm470, %v479, 0.0
    %481 = vadd.xlane.f32.xlu0 %v480
    %v482 = vpop.xlane.xlu0 %481
    %v483 = vrcp.pop %v482
    %v484 = vmul.f32 %v480, %v483
    %v485 = vsel %vm473, %v465, 0.0
    %v486 = vmul.f32 %v485, 1.442695
    %v487 = vpow.pop %v486
    %v488 = vsel %vm473, %v487, %v465
    %v489 = vsel %vm470, %v484, %v488
    %490 = vst [vmem:[#allocation13] sm:$0xff] %v489
    // Predicated region
    $region66: #{tpu_custom_call.1} parent=1 // pred_check
      _
    $region67: #{tpu_custom_call.1} parent=1 // pred_check_branch
      %492 = sbr.rel (0) target = $region69
    $region68: #{tpu_custom_call.1} parent=1 // pred_region
      %s494 = ssub.s32 128, 128
      %495 = vsyncadd [#allocation4], %s494
      %s497 = sshll.u32 [#allocation13], 4
      %s498 = int_to_ptr.vmem [resolvable:$true] %s497
      %500 = dma.vmem_to_hbm [thread:$0]  %s498, 128, %s10, [#allocation4]
    $region69: #{tpu_custom_call.1} parent=1 // pred_fallthru
      _
    // Predicated region
    $region70: #{tpu_custom_call.1} parent=1 // pred_check
      _
    $region71: #{tpu_custom_call.1} parent=1 // pred_check_branch
      %502 = sbr.rel (0) target = $region73
    $region72: #{tpu_custom_call.1} parent=1 // pred_region
      %503 = dma.done [#allocation4], 128
    $region73: #{tpu_custom_call.1} parent=1 // pred_fallthru
      _
    %504 = vsyncpa [#allocation3], 1
    %505 = vsyncpa [#allocation7], 1
    %506 = vsyncpa [#allocation10], 1
    %507 = vsyncpa [#allocation4], 1
    %508 = vsyncpa [#allocation5], 1

</llo_original>
